<compile_context>
chip_gen: v5e
topology: v5e:2x2
jax: 0.10.0
libtpu: 0.0.40
codegen_flags: <defaults>
</compile_context>

<pallas_src>
import jax
import jax.numpy as jnp
from jax.experimental import pallas as pl
from jax.experimental.pallas import tpu as pltpu


def _round_up(x, m):
    return ((x + m - 1) // m) * m


def fasttext_mlp_kernel(x_ref, w1_ref, b1_ref, w2_ref, b2_ref, out_ref):
    # x_ref: (TB, D3p) pooled embeddings (1/S already folded into w1)
    # w1_ref: (D3p, Hp)  b1_ref: (1, Hp)  w2_ref: (Hp, Cp)  b2_ref: (1, Cp)
    # out_ref: (TB, Cp)
    h = jnp.dot(x_ref[...], w1_ref[...],
                preferred_element_type=jnp.float32) + b1_ref[...]
    h = jnp.maximum(h, 0.0)                                   # ReLU
    out = jnp.dot(h, w2_ref[...],
                  preferred_element_type=jnp.float32) + b2_ref[...]
    out_ref[...] = out.astype(out_ref.dtype)


def fasttext_forward(pooled_sum, seq_len, w1, b1, w2, b2):
    """pooled_sum: (B, 3E) sequence-summed embeddings.  Returns (B, C) logits."""
    B, D3 = pooled_sum.shape
    H = w1.shape[1]
    C = w2.shape[1]

    # mean = sum * (1/S): fold the scale into w1 on the host (free).
    w1 = w1 * (1.0 / float(seq_len))

    # ---- lane-dense zero padding of K / hidden / class dims (exact) -------
    D3p = _round_up(D3, 128)
    Hp = _round_up(H, 128)
    Cp = _round_up(C, 128)
    if D3p != D3:
        pooled_sum = jnp.pad(pooled_sum, ((0, 0), (0, D3p - D3)))
        w1 = jnp.pad(w1, ((0, D3p - D3), (0, 0)))
    if Hp != H:
        w1 = jnp.pad(w1, ((0, 0), (0, Hp - H)))
        b1 = jnp.pad(b1, ((0, 0), (0, Hp - H)))
        w2 = jnp.pad(w2, ((0, Hp - H), (0, 0)))
    if Cp != C:
        w2 = jnp.pad(w2, ((0, 0), (0, Cp - C)))
        b2 = jnp.pad(b2, ((0, 0), (0, Cp - C)))

    # ---- batch tile from real VMEM accounting (lane-padded shapes) --------
    # resident weights (counted 2x, conservative) + double-buffered in/out rows
    weight_bytes = 4 * 2 * (D3p * Hp + Hp + Hp * Cp + Cp)
    per_row_bytes = 4 * 2 * (D3p + Cp)
    budget = 32 * 1024 * 1024                       # safe on v5e / v6e / v7x (64 MiB/TC)
    tb_mem = max(8, (budget - weight_bytes) // per_row_bytes)
    tb = min(512, (tb_mem // 8) * 8)
    if B > 32:
        # keep >= 4 grid steps so both v7x TensorCores get work and the
        # pipeline has iterations to double-buffer across.
        tb = min(tb, _round_up(pl.cdiv(B, 4), 8))
    tb = max(8, tb)
    tb = min(tb, _round_up(B, 8))

    Bp = _round_up(B, tb)
    if Bp != B:
        pooled_sum = jnp.pad(pooled_sum, ((0, Bp - B), (0, 0)))
    nb = Bp // tb

    vmem_bytes = weight_bytes + per_row_bytes * tb
    vmem_limit = int(min(max(2 * vmem_bytes, 16 * 1024 * 1024), 48 * 1024 * 1024))

    cost = pl.CostEstimate(
        flops=2 * Bp * (D3p * Hp + Hp * Cp),
        transcendentals=0,
        bytes_accessed=4 * (Bp * D3p + D3p * Hp + Hp + Hp * Cp + Cp + Bp * Cp),
    )

    out = pl.pallas_call(
        fasttext_mlp_kernel,
        out_shape=jax.ShapeDtypeStruct((Bp, Cp), jnp.float32),
        grid=(nb,),
        in_specs=[
            pl.BlockSpec((tb, D3p), lambda i: (i, 0)),   # pooled activations
            pl.BlockSpec((D3p, Hp), lambda i: (0, 0)),   # w1 (resident)
            pl.BlockSpec((1, Hp), lambda i: (0, 0)),     # b1
            pl.BlockSpec((Hp, Cp), lambda i: (0, 0)),    # w2
            pl.BlockSpec((1, Cp), lambda i: (0, 0)),     # b2
        ],
        out_specs=pl.BlockSpec((tb, Cp), lambda i: (i, 0)),
        compiler_params=pltpu.CompilerParams(
            dimension_semantics=("parallel",),
            vmem_limit_bytes=vmem_limit,
        ),
        cost_estimate=cost,
    )(pooled_sum, w1, b1, w2, b2)

    return out[:B, :C]


def model_forward(x_word, x_bigram, x_trigram, params):
    # Gather + sum-pool fused in XLA: only (B, 3E) pooled activations reach the
    # kernel, so the (B, S, E) gathered tensors never round-trip HBM.
    pw = jnp.take(params["emb_word"], x_word, axis=0).sum(axis=1)      # (B, E)
    pb = jnp.take(params["emb_ngram2"], x_bigram, axis=0).sum(axis=1)  # (B, E)
    pt = jnp.take(params["emb_ngram3"], x_trigram, axis=0).sum(axis=1)
    pooled = jnp.concatenate([pw, pb, pt], axis=-1)                    # (B, 3E)
    seq_len = x_word.shape[1]
    return fasttext_forward(pooled, seq_len,
                            params["w1"], params["b1"],
                            params["w2"], params["b2"])


def init_params(key, n_vocab, n_gram_vocab, embed, hidden_size, num_classes):
    ks = jax.random.split(key, 8)
    emb_word = jax.random.normal(ks[0], (n_vocab, embed), jnp.float32) * 0.1
    # padding_idx = n_vocab - 1 -> zero row (matches nn.Embedding padding_idx init)
    emb_word = emb_word.at[n_vocab - 1].set(0.0)
    emb_ngram2 = jax.random.normal(ks[1], (n_gram_vocab, embed), jnp.float32) * 0.1
    emb_ngram3 = jax.random.normal(ks[2], (n_gram_vocab, embed), jnp.float32) * 0.1
    d3 = embed * 3
    lim1 = 1.0 / jnp.sqrt(d3)
    lim2 = 1.0 / jnp.sqrt(hidden_size)
    w1 = jax.random.uniform(ks[3], (d3, hidden_size), jnp.float32, -lim1, lim1)
    b1 = jax.random.uniform(ks[4], (1, hidden_size), jnp.float32, -lim1, lim1)
    w2 = jax.random.uniform(ks[5], (hidden_size, num_classes), jnp.float32, -lim2, lim2)
    b2 = jax.random.uniform(ks[6], (1, num_classes), jnp.float32, -lim2, lim2)
    return {
        "emb_word": emb_word,
        "emb_ngram2": emb_ngram2,
        "emb_ngram3": emb_ngram3,
        "w1": w1, "b1": b1, "w2": w2, "b2": b2,
    }


if __name__ == "__main__":
    # Small config consistent with the module's forward.
    B, S = 2, 8
    n_vocab, n_gram_vocab = 50, 64
    embed, hidden_size, num_classes = 32, 32, 4

    key = jax.random.PRNGKey(0)
    kp, kw, kb, kt = jax.random.split(key, 4)
    params = init_params(kp, n_vocab, n_gram_vocab, embed, hidden_size, num_classes)

    x_word = jax.random.randint(kw, (B, S), 0, n_vocab, jnp.int32)
    x_bigram = jax.random.randint(kb, (B, S), 0, n_gram_vocab, jnp.int32)
    x_trigram = jax.random.randint(kt, (B, S), 0, n_gram_vocab, jnp.int32)

    out = jax.jit(model_forward)(x_word, x_bigram, x_trigram, params)
    jax.block_until_ready(out)

    # Pure-JAX reference check (dropout = identity at inference).
    emb = jnp.concatenate([
        jnp.take(params["emb_word"], x_word, axis=0),
        jnp.take(params["emb_ngram2"], x_bigram, axis=0),
        jnp.take(params["emb_ngram3"], x_trigram, axis=0)], axis=-1)
    ref = jnp.maximum(emb.mean(axis=1) @ params["w1"] + params["b1"], 0.0) \
        @ params["w2"] + params["b2"]
    assert out.shape == (B, num_classes)
    assert jnp.allclose(out, ref, atol=1e-4, rtol=1e-4), \
        float(jnp.max(jnp.abs(out - ref)))

    print("KERNEL_OK")
</pallas_src>

<mosaic_0001>
module attributes {stable_mosaic.version = 11 : i64} {
  func.func @fasttext_mlp_kernel(%arg0: i32, %arg1: memref<8x128xf32, #tpu.memory_space<vmem>>, %arg2: memref<128x128xf32, #tpu.memory_space<vmem>>, %arg3: memref<1x128xf32, #tpu.memory_space<vmem>>, %arg4: memref<128x128xf32, #tpu.memory_space<vmem>>, %arg5: memref<1x128xf32, #tpu.memory_space<vmem>>, %arg6: memref<8x128xf32, #tpu.memory_space<vmem>>) attributes {dimension_semantics = [#tpu.dimension_semantics<parallel>], iteration_bounds = array<i64: 1>, scalar_prefetch = 0 : i64, scratch_operands = 0 : i64, tpu.core_type = #tpu.core_type<tc>, window_params = [{transform_indices = @transform_0, window_bounds = array<i64: 8, 128>}, {pipeline_mode = #tpu.pipeline_mode<synchronous>, transform_indices = @transform_1, window_bounds = array<i64: 128, 128>}, {pipeline_mode = #tpu.pipeline_mode<synchronous>, transform_indices = @transform_2, window_bounds = array<i64: 1, 128>}, {pipeline_mode = #tpu.pipeline_mode<synchronous>, transform_indices = @transform_3, window_bounds = array<i64: 128, 128>}, {pipeline_mode = #tpu.pipeline_mode<synchronous>, transform_indices = @transform_4, window_bounds = array<i64: 1, 128>}, {transform_indices = @transform_5, window_bounds = array<i64: 8, 128>}]} {
    %c0 = arith.constant 0 : index
    %c0_0 = arith.constant 0 : index
    %0 = vector.load %arg1[%c0, %c0_0] : memref<8x128xf32, #tpu.memory_space<vmem>>, vector<8x128xf32>
    %c0_1 = arith.constant 0 : index
    %c0_2 = arith.constant 0 : index
    %1 = vector.load %arg2[%c0_1, %c0_2] : memref<128x128xf32, #tpu.memory_space<vmem>>, vector<128x128xf32>
    %cst = arith.constant dense<0.000000e+00> : vector<8x128xf32>
    %2 = tpu.matmul %0, %1, %cst {dimension_numbers = #tpu.dot_dimension_numbers<[1], [0], [0], [1], [0, 0, 1, 1], [], []>} : vector<8x128xf32>, vector<128x128xf32>, vector<8x128xf32> -> vector<8x128xf32>
    %c0_3 = arith.constant 0 : index
    %c0_4 = arith.constant 0 : index
    %3 = vector.load %arg3[%c0_3, %c0_4] : memref<1x128xf32, #tpu.memory_space<vmem>>, vector<1x128xf32>
    %4 = vector.broadcast %3 : vector<1x128xf32> to vector<8x128xf32>
    %5 = arith.addf %2, %4 : vector<8x128xf32>
    %cst_5 = arith.constant 0.000000e+00 : f32
    %6 = vector.broadcast %cst_5 : f32 to vector<8x128xf32>
    %7 = arith.maximumf %5, %6 : vector<8x128xf32>
    %c0_6 = arith.constant 0 : index
    %c0_7 = arith.constant 0 : index
    %8 = vector.load %arg4[%c0_6, %c0_7] : memref<128x128xf32, #tpu.memory_space<vmem>>, vector<128x128xf32>
    %cst_8 = arith.constant dense<0.000000e+00> : vector<8x128xf32>
    %9 = tpu.matmul %7, %8, %cst_8 {dimension_numbers = #tpu.dot_dimension_numbers<[1], [0], [0], [1], [0, 0, 1, 1], [], []>} : vector<8x128xf32>, vector<128x128xf32>, vector<8x128xf32> -> vector<8x128xf32>
    %c0_9 = arith.constant 0 : index
    %c0_10 = arith.constant 0 : index
    %10 = vector.load %arg5[%c0_9, %c0_10] : memref<1x128xf32, #tpu.memory_space<vmem>>, vector<1x128xf32>
    %11 = vector.broadcast %10 : vector<1x128xf32> to vector<8x128xf32>
    %12 = arith.addf %9, %11 : vector<8x128xf32>
    %c0_11 = arith.constant 0 : index
    %c0_12 = arith.constant 0 : index
    %13 = vector.load %arg6[%c0_11, %c0_12] : memref<8x128xf32, #tpu.memory_space<vmem>>, vector<8x128xf32>
    tpu.vector_store %arg6[%c0_11, %c0_12], %12 {strides = array<i32>} : memref<8x128xf32, #tpu.memory_space<vmem>>, vector<8x128xf32>,
    return
  }
  func.func @transform_0(%arg0: i32) -> (i32, i32) {
    %c0_i32 = arith.constant 0 : i32
    %c0_i32_0 = arith.constant 0 : i32
    return %arg0, %c0_i32 : i32, i32
  }
  func.func @transform_1(%arg0: i32) -> (i32, i32) {
    %c0_i32 = arith.constant 0 : i32
    %c0_i32_0 = arith.constant 0 : i32
    %c0_i32_1 = arith.constant 0 : i32
    return %c0_i32, %c0_i32_0 : i32, i32
  }
  func.func @transform_2(%arg0: i32) -> (i32, i32) {
    %c0_i32 = arith.constant 0 : i32
    %c0_i32_0 = arith.constant 0 : i32
    %c0_i32_1 = arith.constant 0 : i32
    return %c0_i32, %c0_i32_0 : i32, i32
  }
  func.func @transform_3(%arg0: i32) -> (i32, i32) {
    %c0_i32 = arith.constant 0 : i32
    %c0_i32_0 = arith.constant 0 : i32
    %c0_i32_1 = arith.constant 0 : i32
    return %c0_i32, %c0_i32_0 : i32, i32
  }
  func.func @transform_4(%arg0: i32) -> (i32, i32) {
    %c0_i32 = arith.constant 0 : i32
    %c0_i32_0 = arith.constant 0 : i32
    %c0_i32_1 = arith.constant 0 : i32
    return %c0_i32, %c0_i32_0 : i32, i32
  }
  func.func @transform_5(%arg0: i32) -> (i32, i32) {
    %c0_i32 = arith.constant 0 : i32
    %c0_i32_0 = arith.constant 0 : i32
    return %arg0, %c0_i32 : i32, i32
  }
}

</mosaic_0001>

<llo_original>
// kernel: model_forward.1
$region0: #{model_forward.1}
  #allocation0 [shape = 'u32[]', space=smem, size = 0x4, offset = 0x4, fixed_abs, tag = 'smem constant byte address 0x4 - core index']
  #allocation1 [shape = 'u32[72,128]{1,0:T(1,128)}', space=vmem, size = 0x9000, scoped, tag = 'internal scratch']
  %s0 = inlined_call_operand.vmem [shape: f32[8,128], index: 0, kind: input, shape index: {}]
  %s1 = inlined_call_operand.vmem [shape: f32[128,128], index: 1, kind: input, shape index: {}]
  %s2 = inlined_call_operand.vmem [shape: f32[1,128], index: 2, kind: input, shape index: {}]
  %s3 = inlined_call_operand.vmem [shape: f32[128,128], index: 3, kind: input, shape index: {}]
  %s4 = inlined_call_operand.vmem [shape: f32[1,128], index: 4, kind: input, shape index: {}]
  %s5 = inlined_call_operand.vmem [shape: f32[8,128], index: 5, kind: output, shape index: {}]
  %s6 = sld [smem:[#allocation0]]
  $region30: #{model_forward.1} parent=0
    _
  %s8 = ssub.s32 1, %s6
  %s9 = scalar_select 0, %s8, %s6
  // Predicated region
  $region2: #{model_forward.1} parent=0 // pred_check
    _
  $region3: #{model_forward.1} parent=0 // pred_check_branch
    %11 = sbr.rel (0) target = $region5
  $region4: #{model_forward.1} parent=0 // pred_region
    _
  $region5: #{model_forward.1} parent=0 // pred_fallthru
    _
  // Predicated region
  $region6: #{model_forward.1} parent=0 // pred_check
    _
  $region7: #{model_forward.1} parent=0 // pred_check_branch
    %13 = sbr.rel (0) target = $region9
  $region8: #{model_forward.1} parent=0 // pred_region
    _
  $region9: #{model_forward.1} parent=0 // pred_fallthru
    _
  // Predicated region
  $region10: #{model_forward.1} parent=0 // pred_check
    _
  $region11: #{model_forward.1} parent=0 // pred_check_branch
    %15 = sbr.rel (0) target = $region13
  $region12: #{model_forward.1} parent=0 // pred_region
    _
  $region13: #{model_forward.1} parent=0 // pred_fallthru
    _
  // Predicated region
  $region14: #{model_forward.1} parent=0 // pred_check
    _
  $region15: #{model_forward.1} parent=0 // pred_check_branch
    %17 = sbr.rel (0) target = $region17
  $region16: #{model_forward.1} parent=0 // pred_region
    _
  $region17: #{model_forward.1} parent=0 // pred_fallthru
    _
  // Predicated region
  $region18: #{model_forward.1} parent=0 // pred_check
    _
  $region19: #{model_forward.1} parent=0 // pred_check_branch
    %19 = sbr.rel (0) target = $region21
  $region20: #{model_forward.1} parent=0 // pred_region
    _
  $region21: #{model_forward.1} parent=0 // pred_fallthru
    _
  %v20 = vld [vmem:[%s0] sm:$0xff]
  %v21 = vld [vmem:[%s1] sm:$0xff]
  %v22 = vld [vmem:[%s1 + $0x8] sm:$0xff]
  %v23 = vld [vmem:[%s1 + $0x10] sm:$0xff]
  %v24 = vld [vmem:[%s1 + $0x18] sm:$0xff]
  %v25 = vld [vmem:[%s1 + $0x20] sm:$0xff]
  %v26 = vld [vmem:[%s1 + $0x28] sm:$0xff]
  %v27 = vld [vmem:[%s1 + $0x30] sm:$0xff]
  %v28 = vld [vmem:[%s1 + $0x38] sm:$0xff]
  %v29 = vld [vmem:[%s1 + $0x40] sm:$0xff]
  %v30 = vld [vmem:[%s1 + $0x48] sm:$0xff]
  %v31 = vld [vmem:[%s1 + $0x50] sm:$0xff]
  %v32 = vld [vmem:[%s1 + $0x58] sm:$0xff]
  %v33 = vld [vmem:[%s1 + $0x60] sm:$0xff]
  %v34 = vld [vmem:[%s1 + $0x68] sm:$0xff]
  %v35 = vld [vmem:[%s1 + $0x70] sm:$0xff]
  %v36 = vld [vmem:[%s1 + $0x78] sm:$0xff]
  %v37 = vld [vmem:[%s2] sm:$0x1]
  %v39 = vperm.slane %v37, 0
  %41 = vmatpush.msra.mxu0 %v36
  %42 = vmatpush.msra.mxu0 %v35
  %43 = vmatpush.msra.mxu0 %v34
  %44 = vmatpush.msra.mxu0 %v33
  %45 = vmatpush.msra.mxu0 %v32
  %46 = vmatpush.msra.mxu0 %v31
  %47 = vmatpush.msra.mxu0 %v30
  %48 = vmatpush.msra.mxu0 %v29
  %49 = vmatpush.msra.mxu0 %v28
  %50 = vmatpush.msra.mxu0 %v27
  %51 = vmatpush.msra.mxu0 %v26
  %52 = vmatpush.msra.mxu0 %v25
  %53 = vmatpush.msra.mxu0 %v24
  %54 = vmatpush.msra.mxu0 %v23
  %55 = vmatpush.msra.mxu0 %v22
  %56 = vmatpush.msra.mxu0 %v21
  %57 = vmatmul.f32.gmra.mxu0 %v20
  %v58 = vpop.f32.mrf.mxu0
  %v59 = vadd.f32 %v39, %v58
  %60 = vdwg.mxu0
  %v61 = vmax.f32 %v59, 0.0
  %v62 = vld [vmem:[%s3] sm:$0xff]
  %v63 = vld [vmem:[%s3 + $0x8] sm:$0xff]
  %v64 = vld [vmem:[%s3 + $0x10] sm:$0xff]
  %v65 = vld [vmem:[%s3 + $0x18] sm:$0xff]
  %v66 = vld [vmem:[%s3 + $0x20] sm:$0xff]
  %v67 = vld [vmem:[%s3 + $0x28] sm:$0xff]
  %v68 = vld [vmem:[%s3 + $0x30] sm:$0xff]
  %v69 = vld [vmem:[%s3 + $0x38] sm:$0xff]
  %v70 = vld [vmem:[%s3 + $0x40] sm:$0xff]
  %v71 = vld [vmem:[%s3 + $0x48] sm:$0xff]
  %v72 = vld [vmem:[%s3 + $0x50] sm:$0xff]
  %v73 = vld [vmem:[%s3 + $0x58] sm:$0xff]
  %v74 = vld [vmem:[%s3 + $0x60] sm:$0xff]
  %v75 = vld [vmem:[%s3 + $0x68] sm:$0xff]
  %v76 = vld [vmem:[%s3 + $0x70] sm:$0xff]
  %v77 = vld [vmem:[%s3 + $0x78] sm:$0xff]
  %v78 = vld [vmem:[%s4] sm:$0x1]
  %v80 = vperm.slane %v78, 0
  %82 = vmatpush.msra.mxu0 %v77
  %83 = vmatpush.msra.mxu0 %v76
  %84 = vmatpush.msra.mxu0 %v75
  %85 = vmatpush.msra.mxu0 %v74
  %86 = vmatpush.msra.mxu0 %v73
  %87 = vmatpush.msra.mxu0 %v72
  %88 = vmatpush.msra.mxu0 %v71
  %89 = vmatpush.msra.mxu0 %v70
  %90 = vmatpush.msra.mxu0 %v69
  %91 = vmatpush.msra.mxu0 %v68
  %92 = vmatpush.msra.mxu0 %v67
  %93 = vmatpush.msra.mxu0 %v66
  %94 = vmatpush.msra.mxu0 %v65
  %95 = vmatpush.msra.mxu0 %v64
  %96 = vmatpush.msra.mxu0 %v63
  %97 = vmatpush.msra.mxu0 %v62
  %98 = vmatmul.f32.gmra.mxu0 %v61
  %v99 = vpop.f32.mrf.mxu0
  %v100 = vadd.f32 %v80, %v99
  %101 = vdwg.mxu0
  %102 = vst [vmem:[%s5] sm:$0xff] %v100
  // Predicated region
  $region22: #{model_forward.1} parent=0 // pred_check
    _
  $region23: #{model_forward.1} parent=0 // pred_check_branch
    %104 = sbr.rel (0) target = $region25
  $region24: #{model_forward.1} parent=0 // pred_region
    _
  $region25: #{model_forward.1} parent=0 // pred_fallthru
    _
  // Predicated region
  $region26: #{model_forward.1} parent=0 // pred_check
    _
  $region27: #{model_forward.1} parent=0 // pred_check_branch
    %106 = sbr.rel (0) target = $region29
  $region28: #{model_forward.1} parent=0 // pred_region
    _
  $region29: #{model_forward.1} parent=0 // pred_fallthru
    _

</llo_original>
